<compile_context>
chip_gen: v6e
topology: v6e:2x2x1
jax: 0.10.0
libtpu: 0.0.40
codegen_flags: <defaults>
</compile_context>

<pallas_src>
import math

import jax
import jax.numpy as jnp
from jax import lax
from jax.experimental import pallas as pl
from jax.experimental.pallas import tpu as pltpu

LANE = 128


def _round_up(n, m):
    return ((n + m - 1) // m) * m


def make_attention_kernel(T, D, HS, HSp, VSp, TQ, TK):
    """Kernel body for fixed static sizes. Only Python scalars are closed over."""
    inv_sqrt_hs = 1.0 / math.sqrt(HS)   # Python float -> jaxpr literal, not a const
    NEG_BIG = -1e30                     # Python float; diagonal is never masked

    def kernel(xq_ref, xkv_ref, w_ref, out_ref, q_sc, m_sc, l_sc, acc_sc):
        qi = pl.program_id(1)
        ki = pl.program_id(2)
        q_row0 = qi * TQ
        k_col0 = ki * TK

        # ---- init scratch + project Q once per (batch, q-tile) -------------
        @pl.when(ki == 0)
        def _init():
            m_sc[...] = jnp.full_like(m_sc, -jnp.inf)
            l_sc[...] = jnp.zeros_like(l_sc)
            acc_sc[...] = jnp.zeros_like(acc_sc)
            q = jnp.dot(xq_ref[...], w_ref[:, :HSp],
                        preferred_element_type=jnp.float32)
            q_sc[...] = (q * inv_sqrt_hs).astype(jnp.bfloat16)   # scale folded into Q

        # ---- skip kv tiles that lie entirely above the causal diagonal ------
        @pl.when(k_col0 <= q_row0 + (TQ - 1))
        def _compute():
            # K / V projections for this kv tile (bf16 MXU operands, f32 acc)
            k = jnp.dot(xkv_ref[...], w_ref[:, HSp:2 * HSp],
                        preferred_element_type=jnp.float32).astype(jnp.bfloat16)
            v = jnp.dot(xkv_ref[...], w_ref[:, 2 * HSp:2 * HSp + VSp],
                        preferred_element_type=jnp.float32).astype(jnp.bfloat16)

            # scores: contract last dims directly (no explicit K transpose)
            s = lax.dot_general(q_sc[...], k, (((1,), (1,)), ((), ())),
                                preferred_element_type=jnp.float32)   # (TQ, TK) f32

            # per-tile causal mask from 2-D iotas (global row/col indices)
            row = q_row0 + lax.broadcasted_iota(jnp.int32, (TQ, TK), 0)
            col = k_col0 + lax.broadcasted_iota(jnp.int32, (TQ, TK), 1)
            s = jnp.where(col <= row, s, NEG_BIG)

            # online softmax update (all f32)
            m_prev = m_sc[...]
            m_new = jnp.maximum(m_prev, jnp.max(s, axis=-1, keepdims=True))
            alpha = jnp.exp(m_prev - m_new)
            p = jnp.exp(s - m_new)
            l_sc[...] = alpha * l_sc[...] + jnp.sum(p, axis=-1, keepdims=True)
            acc_sc[...] = alpha * acc_sc[...] + jnp.dot(
                p.astype(jnp.bfloat16), v, preferred_element_type=jnp.float32)
            m_sc[...] = m_new

        # ---- finalize: normalize and do one lane-dense (TQ, VSp) store ------
        @pl.when(ki == pl.num_programs(2) - 1)
        def _finalize():
            out_ref[...] = (acc_sc[...] *
                            pl.reciprocal(l_sc[...], approx=True)
                            ).astype(out_ref.dtype)

    return kernel


def prepare_qkv_params(wq, wk, wv):
    """One-time parameter prep: fuse Wq/Wk/Wv, zero-pad each segment to a
    multiple of 128 lanes, cast to bf16. Do NOT call this per forward pass."""
    D, HS = wq.shape
    VS = wv.shape[1]
    HSp = _round_up(HS, LANE)
    VSp = _round_up(VS, LANE)

    def pad_cols(w, tgt):
        return w if w.shape[1] == tgt else jnp.pad(w, ((0, 0), (0, tgt - w.shape[1])))

    w_qkv = jnp.concatenate(
        [pad_cols(wq, HSp), pad_cols(wk, HSp), pad_cols(wv, VSp)], axis=1
    ).astype(jnp.bfloat16)                                  # (D, 2*HSp + VSp)
    return {"w_qkv": w_qkv, "head_size": HS, "value_size": VS}


def masked_self_attention(x, params):
    """x: (B, T, D). params from prepare_qkv_params (weights in (in, out)
    orientation, i.e. the transpose of torch.nn.Linear.weight)."""
    w_qkv = params["w_qkv"]
    HS = params["head_size"]
    VS = params["value_size"]
    B, T, D = x.shape
    HSp = _round_up(HS, LANE)
    VSp = _round_up(VS, LANE)
    F = 2 * HSp + VSp
    assert w_qkv.shape == (D, F)

    # Tile sizes: 128 rows (MXU-friendly on all generations) when T divides,
    # otherwise the full (small) sequence as a single tile.
    TQ = 128 if T % 128 == 0 else T
    TK = 128 if T % 128 == 0 else T
    nq, nkv = T // TQ, T // TK

    # bf16 activations at the call boundary: halves HBM->VMEM input traffic.
    x_bf = x.astype(jnp.bfloat16)

    kernel = make_attention_kernel(T, D, HS, HSp, VSp, TQ, TK)

    # Advisory cost estimate for XLA's scheduler.
    flops = int(2 * B * T * D * F + 2 * B * T * T * HSp + 2 * B * T * T * VSp)
    cost = pl.CostEstimate(
        flops=flops,
        transcendentals=int(B * T * T),
        bytes_accessed=int(2 * x_bf.size * 2 + w_qkv.size * 2 + B * T * VSp * 4))

    # VMEM budget: ~2 buffers per I/O tile + resident weight + scratch +
    # in-kernel temporaries, with generous margin; clamped under v7x's 64 MiB.
    tile_bytes = 2 * (TQ * D * 2 + TK * D * 2 + D * F * 2 + TQ * VSp * 4)
    scratch_bytes = TQ * HSp * 2 + 2 * TQ * 4 + TQ * VSp * 4
    temp_bytes = 4 * TQ * TK * 4 + 2 * TK * (HSp + VSp) * 2
    vmem_limit = int(min(max(4 * (tile_bytes + scratch_bytes + temp_bytes),
                             16 * 1024 * 1024), 48 * 1024 * 1024))

    out_pad = pl.pallas_call(
        kernel,
        out_shape=jax.ShapeDtypeStruct((B, T, VSp), jnp.float32),
        grid=(B, nq, nkv),
        in_specs=[
            # x for the query tile
            pl.BlockSpec((None, TQ, D), lambda b, qi, ki: (b, qi, 0)),
            # x for the key/value tile
            pl.BlockSpec((None, TK, D), lambda b, qi, ki: (b, ki, 0)),
            # fused QKV weight: constant index_map -> VMEM-resident, no re-DMA
            pl.BlockSpec((D, F), lambda b, qi, ki: (0, 0)),
        ],
        out_specs=pl.BlockSpec((None, TQ, VSp), lambda b, qi, ki: (b, qi, 0)),
        scratch_shapes=[
            pltpu.VMEM((TQ, HSp), jnp.bfloat16),   # cached scaled Q
            pltpu.VMEM((TQ, 1), jnp.float32),      # running max m
            pltpu.VMEM((TQ, 1), jnp.float32),      # running denom l
            pltpu.VMEM((TQ, VSp), jnp.float32),    # output accumulator
        ],
        compiler_params=pltpu.CompilerParams(
            dimension_semantics=("parallel", "parallel", "arbitrary"),
            vmem_limit_bytes=vmem_limit),
        cost_estimate=cost,
    )(x_bf, x_bf, w_qkv)

    return out_pad[..., :VS]   # strip lane padding


def reference_forward(x, wq, wk, wv):
    """Plain-JAX f32 replica of the PyTorch module's forward."""
    T = x.shape[1]
    HS = wq.shape[1]
    q = x @ wq
    k = x @ wk
    v = x @ wv
    w = jnp.einsum("btd,bsd->bts", q, k)
    mask = jnp.tril(jnp.ones((T, T), jnp.float32))
    w = jnp.where(mask == 0, -jnp.inf, w)
    w = jax.nn.softmax(w / math.sqrt(HS), axis=-1)
    return jnp.einsum("bts,bsv->btv", w, v)


if __name__ == "__main__":
    # batch=2, seq=8, input_size=32, head_size=16, value_size=16
    B, T, D, HS, VS = 2, 8, 32, 16, 16

    key = jax.random.PRNGKey(0)
    kx, kq, kk, kv = jax.random.split(key, 4)
    x = jax.random.normal(kx, (B, T, D), jnp.float32)
    scale = 0.05
    wq = scale * jax.random.normal(kq, (D, HS), jnp.float32)
    wk = scale * jax.random.normal(kk, (D, HS), jnp.float32)
    wv = scale * jax.random.normal(kv, (D, VS), jnp.float32)

    params = prepare_qkv_params(wq, wk, wv)   # one-time parameter prep
    out = masked_self_attention(x, params)
    out = jax.block_until_ready(out)

    ref = reference_forward(x, wq, wk, wv)
    assert out.shape == (B, T, VS)
    # bf16 MXU operands + approx reciprocal => ~1e-3 abs deviation from the
    # pure-f32 reference; comfortably inside 2e-2.
    assert jnp.allclose(out, ref, atol=2e-2, rtol=2e-2), (
        "mismatch vs reference: max abs diff = "
        f"{float(jnp.max(jnp.abs(out - ref)))}")

    print("KERNEL_OK")
</pallas_src>

<mosaic_0001>
module attributes {stable_mosaic.version = 11 : i64} {
  func.func @kernel(%arg0: i32, %arg1: i32, %arg2: i32, %arg3: memref<1x8x32xbf16, #tpu.memory_space<vmem>>, %arg4: memref<1x8x32xbf16, #tpu.memory_space<vmem>>, %arg5: memref<32x384xbf16, #tpu.memory_space<vmem>>, %arg6: memref<1x8x128xf32, #tpu.memory_space<vmem>>, %arg7: memref<8x128xbf16, #tpu.memory_space<vmem>>, %arg8: memref<8x1xf32, #tpu.memory_space<vmem>>, %arg9: memref<8x1xf32, #tpu.memory_space<vmem>>, %arg10: memref<8x128xf32, #tpu.memory_space<vmem>>) attributes {dimension_semantics = [#tpu.dimension_semantics<parallel>, #tpu.dimension_semantics<parallel>, #tpu.dimension_semantics<arbitrary>], iteration_bounds = array<i64: 2, 1, 1>, scalar_prefetch = 0 : i64, scratch_operands = 4 : i64, tpu.core_type = #tpu.core_type<tc>, window_params = [{transform_indices = @transform_0, window_bounds = array<i64: 1, 8, 32>}, {transform_indices = @transform_1, window_bounds = array<i64: 1, 8, 32>}, {pipeline_mode = #tpu.pipeline_mode<synchronous>, transform_indices = @transform_2, window_bounds = array<i64: 32, 384>}, {transform_indices = @transform_3, window_bounds = array<i64: 1, 8, 128>}]} {
    %c8_i32 = arith.constant 8 : i32
    %0 = arith.muli %arg1, %c8_i32 : i32
    %c8_i32_0 = arith.constant 8 : i32
    %1 = arith.muli %arg2, %c8_i32_0 : i32
    %c0_i32 = arith.constant 0 : i32
    %2 = arith.cmpi eq, %arg2, %c0_i32 : i32
    %3 = arith.extui %2 : i1 to i32
    %c0_i32_1 = arith.constant 0 : i32
    %4 = arith.cmpi ne, %3, %c0_i32_1 : i32
    scf.if %4 {
      %cst = arith.constant 0xFF800000 : f32
      %12 = vector.broadcast %cst : f32 to vector<8x1xf32>
      %c0 = arith.constant 0 : index
      %c0_5 = arith.constant 0 : index
      %13 = vector.load %arg8[%c0, %c0_5] : memref<8x1xf32, #tpu.memory_space<vmem>>, vector<8x1xf32>
      tpu.vector_store %arg8[%c0, %c0_5], %12 {strides = array<i32>} : memref<8x1xf32, #tpu.memory_space<vmem>>, vector<8x1xf32>,
      %cst_6 = arith.constant 0.000000e+00 : f32
      %14 = vector.broadcast %cst_6 : f32 to vector<8x1xf32>
      %c0_7 = arith.constant 0 : index
      %c0_8 = arith.constant 0 : index
      %15 = vector.load %arg9[%c0_7, %c0_8] : memref<8x1xf32, #tpu.memory_space<vmem>>, vector<8x1xf32>
      tpu.vector_store %arg9[%c0_7, %c0_8], %14 {strides = array<i32>} : memref<8x1xf32, #tpu.memory_space<vmem>>, vector<8x1xf32>,
      %cst_9 = arith.constant 0.000000e+00 : f32
      %16 = vector.broadcast %cst_9 : f32 to vector<8x128xf32>
      %c0_10 = arith.constant 0 : index
      %c0_11 = arith.constant 0 : index
      %17 = vector.load %arg10[%c0_10, %c0_11] : memref<8x128xf32, #tpu.memory_space<vmem>>, vector<8x128xf32>
      tpu.vector_store %arg10[%c0_10, %c0_11], %16 {strides = array<i32>} : memref<8x128xf32, #tpu.memory_space<vmem>>, vector<8x128xf32>,
      %c0_12 = arith.constant 0 : index
      %c0_13 = arith.constant 0 : index
      %c0_14 = arith.constant 0 : index
      %18 = vector.load %arg3[%c0_12, %c0_13, %c0_14] : memref<1x8x32xbf16, #tpu.memory_space<vmem>>, vector<1x8x32xbf16>
      %19 = vector.shape_cast %18 : vector<1x8x32xbf16> to vector<8x32xbf16>
      %c0_15 = arith.constant 0 : index
      %c0_16 = arith.constant 0 : index
      %20 = vector.load %arg5[%c0_15, %c0_16] : memref<32x384xbf16, #tpu.memory_space<vmem>>, vector<32x128xbf16>
      %cst_17 = arith.constant dense<0.000000e+00> : vector<8x128xf32>
      %21 = tpu.matmul %19, %20, %cst_17 {dimension_numbers = #tpu.dot_dimension_numbers<[1], [0], [0], [1], [0, 0, 1, 1], [], []>} : vector<8x32xbf16>, vector<32x128xbf16>, vector<8x128xf32> -> vector<8x128xf32>
      %cst_18 = arith.constant 2.500000e-01 : f32
      %22 = vector.broadcast %cst_18 : f32 to vector<8x128xf32>
      %23 = arith.mulf %21, %22 : vector<8x128xf32>
      %24 = arith.truncf %23 : vector<8x128xf32> to vector<8x128xbf16>
      %c0_19 = arith.constant 0 : index
      %c0_20 = arith.constant 0 : index
      %25 = vector.load %arg7[%c0_19, %c0_20] : memref<8x128xbf16, #tpu.memory_space<vmem>>, vector<8x128xbf16>
      tpu.vector_store %arg7[%c0_19, %c0_20], %24 {strides = array<i32>} : memref<8x128xbf16, #tpu.memory_space<vmem>>, vector<8x128xbf16>,
    } else {
    }
    %c7_i32 = arith.constant 7 : i32
    %5 = arith.addi %0, %c7_i32 : i32
    %6 = arith.cmpi sle, %1, %5 : i32
    %7 = arith.extui %6 : i1 to i32
    %c0_i32_2 = arith.constant 0 : i32
    %8 = arith.cmpi ne, %7, %c0_i32_2 : i32
    scf.if %8 {
      %c0 = arith.constant 0 : index
      %c0_5 = arith.constant 0 : index
      %c0_6 = arith.constant 0 : index
      %12 = vector.load %arg4[%c0, %c0_5, %c0_6] : memref<1x8x32xbf16, #tpu.memory_space<vmem>>, vector<1x8x32xbf16>
      %13 = vector.shape_cast %12 : vector<1x8x32xbf16> to vector<8x32xbf16>
      %c0_7 = arith.constant 0 : index
      %c128 = arith.constant 128 : index
      %14 = vector.load %arg5[%c0_7, %c128] : memref<32x384xbf16, #tpu.memory_space<vmem>>, vector<32x128xbf16>
      %cst = arith.constant dense<0.000000e+00> : vector<8x128xf32>
      %15 = tpu.matmul %13, %14, %cst {dimension_numbers = #tpu.dot_dimension_numbers<[1], [0], [0], [1], [0, 0, 1, 1], [], []>} : vector<8x32xbf16>, vector<32x128xbf16>, vector<8x128xf32> -> vector<8x128xf32>
      %16 = arith.truncf %15 : vector<8x128xf32> to vector<8x128xbf16>
      %c0_8 = arith.constant 0 : index
      %c0_9 = arith.constant 0 : index
      %c0_10 = arith.constant 0 : index
      %17 = vector.load %arg4[%c0_8, %c0_9, %c0_10] : memref<1x8x32xbf16, #tpu.memory_space<vmem>>, vector<1x8x32xbf16>
      %18 = vector.shape_cast %17 : vector<1x8x32xbf16> to vector<8x32xbf16>
      %c0_11 = arith.constant 0 : index
      %c256 = arith.constant 256 : index
      %19 = vector.load %arg5[%c0_11, %c256] : memref<32x384xbf16, #tpu.memory_space<vmem>>, vector<32x128xbf16>
      %cst_12 = arith.constant dense<0.000000e+00> : vector<8x128xf32>
      %20 = tpu.matmul %18, %19, %cst_12 {dimension_numbers = #tpu.dot_dimension_numbers<[1], [0], [0], [1], [0, 0, 1, 1], [], []>} : vector<8x32xbf16>, vector<32x128xbf16>, vector<8x128xf32> -> vector<8x128xf32>
      %21 = arith.truncf %20 : vector<8x128xf32> to vector<8x128xbf16>
      %c0_13 = arith.constant 0 : index
      %c0_14 = arith.constant 0 : index
      %22 = vector.load %arg7[%c0_13, %c0_14] : memref<8x128xbf16, #tpu.memory_space<vmem>>, vector<8x128xbf16>
      %cst_15 = arith.constant dense<0.000000e+00> : vector<8x8xf32>
      %23 = tpu.matmul %22, %16, %cst_15 {dimension_numbers = #tpu.dot_dimension_numbers<[1], [1], [0], [0], [0, 0, 1, 0], [], []>} : vector<8x128xbf16>, vector<8x128xbf16>, vector<8x8xf32> -> vector<8x8xf32>
      %24 = tpu.iota {dimensions = array<i32: 0>} : vector<8x8xi32>
      %25 = vector.broadcast %0 : i32 to vector<8x8xi32>
      %26 = arith.addi %25, %24 : vector<8x8xi32>
      %27 = tpu.iota {dimensions = array<i32: 1>} : vector<8x8xi32>
      %28 = vector.broadcast %1 : i32 to vector<8x8xi32>
      %29 = arith.addi %28, %27 : vector<8x8xi32>
      %30 = arith.cmpi sle, %29, %26 : vector<8x8xi32>
      %cst_16 = arith.constant -1.000000e+30 : f32
      %31 = vector.broadcast %cst_16 : f32 to vector<8x8xf32>
      %32 = arith.select %30, %23, %31 : vector<8x8xi1>, vector<8x8xf32>
      %c0_17 = arith.constant 0 : index
      %c0_18 = arith.constant 0 : index
      %33 = vector.load %arg8[%c0_17, %c0_18] : memref<8x1xf32, #tpu.memory_space<vmem>>, vector<8x1xf32>
      %cst_19 = arith.constant dense<0xFF800000> : vector<8xf32>
      %34 = vector.multi_reduction <maximumf>, %32, %cst_19 [1] : vector<8x8xf32> to vector<8xf32>
      %35 = vector.shape_cast %34 : vector<8xf32> to vector<8x1xf32>
      %36 = arith.maximumf %33, %35 : vector<8x1xf32>
      %37 = arith.subf %33, %36 : vector<8x1xf32>
      %38 = math.exp %37 : vector<8x1xf32>
      %39 = vector.broadcast %36 : vector<8x1xf32> to vector<8x8xf32>
      %40 = arith.subf %32, %39 : vector<8x8xf32>
      %41 = math.exp %40 : vector<8x8xf32>
      %c0_20 = arith.constant 0 : index
      %c0_21 = arith.constant 0 : index
      %42 = vector.load %arg9[%c0_20, %c0_21] : memref<8x1xf32, #tpu.memory_space<vmem>>, vector<8x1xf32>
      %43 = arith.mulf %38, %42 : vector<8x1xf32>
      %cst_22 = arith.constant dense<0.000000e+00> : vector<8xf32>
      %44 = vector.multi_reduction <add>, %41, %cst_22 [1] : vector<8x8xf32> to vector<8xf32>
      %45 = vector.shape_cast %44 : vector<8xf32> to vector<8x1xf32>
      %46 = arith.addf %43, %45 : vector<8x1xf32>
      %c0_23 = arith.constant 0 : index
      %c0_24 = arith.constant 0 : index
      %47 = vector.load %arg9[%c0_23, %c0_24] : memref<8x1xf32, #tpu.memory_space<vmem>>, vector<8x1xf32>
      tpu.vector_store %arg9[%c0_23, %c0_24], %46 {strides = array<i32>} : memref<8x1xf32, #tpu.memory_space<vmem>>, vector<8x1xf32>,
      %c0_25 = arith.constant 0 : index
      %c0_26 = arith.constant 0 : index
      %48 = vector.load %arg10[%c0_25, %c0_26] : memref<8x128xf32, #tpu.memory_space<vmem>>, vector<8x128xf32>
      %49 = vector.broadcast %38 : vector<8x1xf32> to vector<8x128xf32>
      %50 = arith.mulf %49, %48 : vector<8x128xf32>
      %51 = arith.truncf %41 : vector<8x8xf32> to vector<8x8xbf16>
      %cst_27 = arith.constant dense<0.000000e+00> : vector<8x128xf32>
      %52 = tpu.matmul %51, %21, %cst_27 {dimension_numbers = #tpu.dot_dimension_numbers<[1], [0], [0], [1], [0, 0, 1, 1], [], []>} : vector<8x8xbf16>, vector<8x128xbf16>, vector<8x128xf32> -> vector<8x128xf32>
      %53 = arith.addf %50, %52 : vector<8x128xf32>
      %c0_28 = arith.constant 0 : index
      %c0_29 = arith.constant 0 : index
      %54 = vector.load %arg10[%c0_28, %c0_29] : memref<8x128xf32, #tpu.memory_space<vmem>>, vector<8x128xf32>
      tpu.vector_store %arg10[%c0_28, %c0_29], %53 {strides = array<i32>} : memref<8x128xf32, #tpu.memory_space<vmem>>, vector<8x128xf32>,
      %c0_30 = arith.constant 0 : index
      %c0_31 = arith.constant 0 : index
      %55 = vector.load %arg8[%c0_30, %c0_31] : memref<8x1xf32, #tpu.memory_space<vmem>>, vector<8x1xf32>
      tpu.vector_store %arg8[%c0_30, %c0_31], %36 {strides = array<i32>} : memref<8x1xf32, #tpu.memory_space<vmem>>, vector<8x1xf32>,
    } else {
    }
    %c0_i32_3 = arith.constant 0 : i32
    %9 = arith.cmpi eq, %arg2, %c0_i32_3 : i32
    %10 = arith.extui %9 : i1 to i32
    %c0_i32_4 = arith.constant 0 : i32
    %11 = arith.cmpi ne, %10, %c0_i32_4 : i32
    scf.if %11 {
      %c0 = arith.constant 0 : index
      %c0_5 = arith.constant 0 : index
      %12 = vector.load %arg10[%c0, %c0_5] : memref<8x128xf32, #tpu.memory_space<vmem>>, vector<8x128xf32>
      %c0_6 = arith.constant 0 : index
      %c0_7 = arith.constant 0 : index
      %13 = vector.load %arg9[%c0_6, %c0_7] : memref<8x1xf32, #tpu.memory_space<vmem>>, vector<8x1xf32>
      %14 = tpu.reciprocal %13 {approx = true} : vector<8x1xf32> -> vector<8x1xf32>
      %15 = vector.broadcast %14 : vector<8x1xf32> to vector<8x128xf32>
      %16 = arith.mulf %12, %15 : vector<8x128xf32>
      %c0_8 = arith.constant 0 : index
      %c0_9 = arith.constant 0 : index
      %c0_10 = arith.constant 0 : index
      %17 = vector.load %arg6[%c0_8, %c0_9, %c0_10] : memref<1x8x128xf32, #tpu.memory_space<vmem>>, vector<1x8x128xf32>
      %18 = vector.shape_cast %17 : vector<1x8x128xf32> to vector<8x128xf32>
      %19 = vector.shape_cast %16 : vector<8x128xf32> to vector<1x8x128xf32>
      tpu.vector_store %arg6[%c0_8, %c0_9, %c0_10], %19 {strides = array<i32>} : memref<1x8x128xf32, #tpu.memory_space<vmem>>, vector<1x8x128xf32>,
    } else {
    }
    return
  }
  func.func @transform_0(%arg0: i32, %arg1: i32, %arg2: i32) -> (i32, i32, i32) {
    %c0_i32 = arith.constant 0 : i32
    %c0_i32_0 = arith.constant 0 : i32
    return %arg0, %arg1, %c0_i32 : i32, i32, i32
  }
  func.func @transform_1(%arg0: i32, %arg1: i32, %arg2: i32) -> (i32, i32, i32) {
    %c0_i32 = arith.constant 0 : i32
    %c0_i32_0 = arith.constant 0 : i32
    return %arg0, %arg2, %c0_i32 : i32, i32, i32
  }
  func.func @transform_2(%arg0: i32, %arg1: i32, %arg2: i32) -> (i32, i32) {
    %c0_i32 = arith.constant 0 : i32
    %c0_i32_0 = arith.constant 0 : i32
    %c0_i32_1 = arith.constant 0 : i32
    return %c0_i32, %c0_i32_0 : i32, i32
  }
  func.func @transform_3(%arg0: i32, %arg1: i32, %arg2: i32) -> (i32, i32, i32) {
    %c0_i32 = arith.constant 0 : i32
    %c0_i32_0 = arith.constant 0 : i32
    return %arg0, %arg1, %c0_i32 : i32, i32, i32
  }
}

</mosaic_0001>

<llo_original>
// kernel: tpu_custom_call.1
$region0: #{tpu_custom_call.1}
  #allocation0 [shape = 'u32[]', space=smem, size = 0x4, offset = 0x4, fixed_abs, tag = 'smem constant byte address 0x4 - core index']
  #allocation1 [shape = 'u32[144,128]{1,0:T(1,128)}', space=vmem, size = 0x12000, scoped, tag = 'internal scratch']
  #allocation2 [shape = 'bf16[8,128]{1,0:T(8,128)(2,1)}', space=vmem, size = 0x800, scoped, tag = 'scratch operand']
  #allocation3 [shape = 'f32[8,1]{1,0:T(8,128)}', space=vmem, size = 0x1000, scoped, tag = 'scratch operand']
  #allocation4 [shape = 'f32[8,1]{1,0:T(8,128)}', space=vmem, size = 0x1000, scoped, tag = 'scratch operand']
  #allocation5 [shape = 'f32[8,128]{1,0:T(8,128)}', space=vmem, size = 0x1000, scoped, tag = 'scratch operand']
  %s0 = inlined_call_operand.hbm [shape: bf16[2,8,32], index: 0, kind: input, shape index: {}]
  %s1 = inlined_call_operand.hbm [shape: bf16[2,8,32], index: 1, kind: input, shape index: {}]
  %s2 = inlined_call_operand.hbm [shape: bf16[32,384], index: 2, kind: input, shape index: {}]
  %s3 = inlined_call_operand.hbm [shape: f32[2,8,128], index: 3, kind: output, shape index: {}]
  %s4 = sld [smem:[#allocation0]]
  $region69: #{tpu_custom_call.1} parent=0
    _
  %s6 = ssub.s32 1, %s4
  %s7 = scalar_select 0, %s6, %s4
  $region1: #{tpu_custom_call.1} parent=0
    #allocation6 [shape = 'u8[4096]{0}', space=vmem, size = 0x1000, scoped, tag = 'input window, operand 0']
    #allocation7 [shape = 's32[2]{0}', space=sflag, size = 0x8, scoped, tag = 'scoped memory for tpu_custom_call.1']
    #allocation8 [shape = 's32[2]{0}', space=sflag, size = 0x8, scoped, tag = 'scoped memory for tpu_custom_call.1']
    #allocation9 [shape = 'u8[4096]{0}', space=vmem, size = 0x1000, scoped, tag = 'input window, operand 1']
    #allocation10 [shape = 's32[2]{0}', space=sflag, size = 0x8, scoped, tag = 'scoped memory for tpu_custom_call.1']
    #allocation11 [shape = 'u8[24576]{0}', space=vmem, size = 0x6000, scoped, tag = 'input window, operand 2, single buffered']
    #allocation12 [shape = 'u8[8192]{0}', space=vmem, size = 0x2000, scoped, tag = 'output window, operand 0']
    %8 = vsyncpa [#allocation7], 0
    %s9 = scalar_lea.sflag [#allocation7], 1
    %10 = vsyncpa %s9, 0
    %11 = vsyncpa [#allocation10], 0
    %s12 = scalar_lea.sflag [#allocation10], 1
    %13 = vsyncpa %s12, 0
    %14 = vsyncpa [#allocation8], 0
    %s15 = scalar_lea.sflag [#allocation8], 1
    %16 = vsyncpa %s15, 0
    loop: start=0, step=1, limit=4
    $region2: #{tpu_custom_call.1} parent=1 // loop_pre_header
      _
    $region3: #{tpu_custom_call.1} parent=1 // loop_header
      %s18 = sphi 0, %s22
      %p19 = scmp.ge.s32.totalorder %s18, 4
      %s25 = sphi 0, %s44
      %s26 = sphi 0, %s40
      %s27 = sphi 0, %s36
      %s28 = sphi 0, %s25
      %s29 = sphi 0, %s26
      %s30 = sphi 0, %s27
      %s31 = sphi 0, %s28
      %s32 = sphi 0, %s29
      %s33 = sphi 0, %s30
      %s49 = sphi 0, %s51
      %s52 = sphi 0, %s49
      %s53 = sphi 0, %s52
      %s69 = sphi 0, %s53
      %s77 = sphi 0, %s79
      %s80 = sphi 0, %s77
      %s81 = sphi 0, %s80
      %s97 = sphi 0, %s81
      %s101 = sphi 0, %s101
      %s103 = sphi 0, %s101
      %s104 = sphi 0, %s103
      %s118 = sphi 0, %s104
      %s126 = sphi 0, %s128
      %s129 = sphi 0, %s126
      %s130 = sphi 0, %s129
      %s146 = sphi 0, %s130
    $region4: #{tpu_custom_call.1} parent=1 // loop_header_branch
      %21 = sbr.rel (%p19) target = $region8
    $region5: #{tpu_custom_call.1} parent=1 // loop_body
      %s23 = ssub.s32 %s18, 1
      %s24 = ssub.s32 %s18, 2
      %s34 = sadd.s32 1, %s27
      %p35 = scmp.ge.s32.totalorder %s34, 1
      %s36 = scalar_select %p35, 0, %s34
      %s37 = sadd.s32 1, %s26
      %s38 = scalar_select %p35, %s37, %s26
      %p39 = scmp.ge.s32.totalorder %s38, 1
      %s40 = scalar_select %p39, 0, %s38
      %s41 = sadd.s32 1, %s25
      %s42 = scalar_select %p39, %s41, %s25
      %p43 = scmp.ge.s32.totalorder %s42, 2
      %s44 = scalar_select %p43, 0, %s42
      %s45 = ssub.s32 %s25, %s44
      %s46 = ssub.s32 %s26, %s40
      %s47 = sor.u32 %s45, %s46
      %p48 = scmp.eq.s32.totalorder %s47, 0
      %s50 = sadd.s32 %s49, 1
      %s51 = scalar_select %p48, %s49, %s50
      %p54 = pneg %p48
      %p55 = scmp.eq.s32.totalorder %s18, 1
      %p56 = por %p54, %p55
      %p57 = scmp.ne.s32.totalorder %s49, %s52
      %p58 = scmp.eq.s32.totalorder %s18, 0
      %p59 = por %p57, %p58
      %p60 = scmp.ne.s32.totalorder %s49, %s52
      %p61 = scmp.eq.s32.totalorder %s23, 1
      %p62 = por %p60, %p61
      %p63 = scmp.ne.s32.totalorder %s52, %s53
      %p64 = scmp.eq.s32.totalorder %s23, 0
      %p65 = por %p63, %p64
      %p66 = scmp.ne.s32.totalorder %s52, %s53
      %p67 = scmp.eq.s32.totalorder %s24, 1
      %p68 = por %p66, %p67
      %p70 = scmp.ne.s32.totalorder %s53, %s69
      %p71 = scmp.eq.s32.totalorder %s24, 0
      %p72 = por %p70, %p71
      %s73 = ssub.s32 %s25, %s44
      %s74 = ssub.s32 %s27, %s36
      %s75 = sor.u32 %s73, %s74
      %p76 = scmp.eq.s32.totalorder %s75, 0
      %s78 = sadd.s32 %s77, 1
      %s79 = scalar_select %p76, %s77, %s78
      %p82 = pneg %p76
      %p83 = scmp.eq.s32.totalorder %s18, 1
      %p84 = por %p82, %p83
      %p85 = scmp.ne.s32.totalorder %s77, %s80
      %p86 = scmp.eq.s32.totalorder %s18, 0
      %p87 = por %p85, %p86
      %p88 = scmp.ne.s32.totalorder %s77, %s80
      %p89 = scmp.eq.s32.totalorder %s23, 1
      %p90 = por %p88, %p89
      %p91 = scmp.ne.s32.totalorder %s80, %s81
      %p92 = scmp.eq.s32.totalorder %s23, 0
      %p93 = por %p91, %p92
      %p94 = scmp.ne.s32.totalorder %s80, %s81
      %p95 = scmp.eq.s32.totalorder %s24, 1
      %p96 = por %p94, %p95
      %p98 = scmp.ne.s32.totalorder %s81, %s97
      %p99 = scmp.eq.s32.totalorder %s24, 0
      %p100 = por %p98, %p99
      %s102 = sadd.s32 %s101, 1
      %p105 = scmp.eq.s32.totalorder %s18, 1
      %p106 = scmp.ne.s32.totalorder %s101, %s103
      %p107 = scmp.eq.s32.totalorder %s18, 0
      %p108 = por %p106, %p107
      %p109 = scmp.ne.s32.totalorder %s101, %s103
      %p110 = scmp.eq.s32.totalorder %s23, 1
      %p111 = por %p109, %p110
      %p112 = scmp.ne.s32.totalorder %s103, %s104
      %p113 = scmp.eq.s32.totalorder %s23, 0
      %p114 = por %p112, %p113
      %p115 = scmp.ne.s32.totalorder %s103, %s104
      %p116 = scmp.eq.s32.totalorder %s24, 1
      %p117 = por %p115, %p116
      %p119 = scmp.ne.s32.totalorder %s104, %s118
      %p120 = scmp.eq.s32.totalorder %s24, 0
      %p121 = por %p119, %p120
      %s122 = ssub.s32 %s25, %s44
      %s123 = ssub.s32 %s26, %s40
      %s124 = sor.u32 %s122, %s123
      %p125 = scmp.eq.s32.totalorder %s124, 0
      %s127 = sadd.s32 %s126, 1
      %s128 = scalar_select %p125, %s126, %s127
      %p131 = pneg %p125
      %p132 = scmp.eq.s32.totalorder %s18, 1
      %p133 = por %p131, %p132
      %p134 = scmp.ne.s32.totalorder %s126, %s129
      %p135 = scmp.eq.s32.totalorder %s18, 0
      %p136 = por %p134, %p135
      %p137 = scmp.ne.s32.totalorder %s126, %s129
      %p138 = scmp.eq.s32.totalorder %s23, 1
      %p139 = por %p137, %p138
      %p140 = scmp.ne.s32.totalorder %s129, %s130
      %p141 = scmp.eq.s32.totalorder %s23, 0
      %p142 = por %p140, %p141
      %p143 = scmp.ne.s32.totalorder %s129, %s130
      %p144 = scmp.eq.s32.totalorder %s24, 1
      %p145 = por %p143, %p144
      %p147 = scmp.ne.s32.totalorder %s130, %s146
      %p148 = scmp.eq.s32.totalorder %s24, 0
      %p149 = por %p147, %p148
      %p150 = scmp.le.s32.totalorder 1, %s18
      %p151 = scmp.lt.s32.totalorder %s18, 3
      %p152 = pnand %p150, %p151
      %p153 = pneg %p152
      // Predicated region
      $region9: #{tpu_custom_call.1} parent=5 // pred_check
        _
      $region10: #{tpu_custom_call.1} parent=5 // pred_check_branch
        %155 = sbr.rel (%p152) target = $region12
      $region11: #{tpu_custom_call.1} parent=5 // pred_region
        %s156 = ssub.s32 %s18, 1
        // Predicated region
        $region13: #{tpu_custom_call.1} parent=11 // pred_check
          %p157 = pneg %p114
        $region14: #{tpu_custom_call.1} parent=11 // pred_check_branch
          %159 = sbr.rel (%p157) target = $region16
        $region15: #{tpu_custom_call.1} parent=11 // pred_region
          %s161 = ssub.s32 768, 768
          %162 = vsyncadd [#allocation10], %s161
          %s163 = sshll.u32 [#allocation11], 4
          %s164 = int_to_ptr.vmem [resolvable:$true] %s163
          %169 = dma.hbm_to_vmem [thread:$0]  %s2, 768, %s164, [#allocation10], 192, 192, 12
        $region16: #{tpu_custom_call.1} parent=11 // pred_fallthru
          _
      $region12: #{tpu_custom_call.1} parent=5 // pred_fallthru
        _
      %p170 = scmp.lt.s32.totalorder %s18, 2
      // Predicated region
      $region17: #{tpu_custom_call.1} parent=5 // pred_check
        %p171 = pneg %p170
      $region18: #{tpu_custom_call.1} parent=5 // pred_check_branch
        %173 = sbr.rel (%p171) target = $region20
      $region19: #{tpu_custom_call.1} parent=5 // pred_region
        // Predicated region
        $region21: #{tpu_custom_call.1} parent=19 // pred_check
          %p174 = pneg %p59
        $region22: #{tpu_custom_call.1} parent=19 // pred_check_branch
          %176 = sbr.rel (%p174) target = $region24
        $region23: #{tpu_custom_call.1} parent=19 // pred_region
          %s177 = sand.u32 %s49, 1
          %s178 = scalar_lea.sflag [#allocation7], %s177
          %s179 = sand.u32 %s49, 1
          %s180 = smul.addr %s179, 4
          %s181 = scalar_lea.vmem [#allocation6], %s180
          %s183 = ssub.s32 64, 64
          %184 = vsyncadd %s178, %s183
          %s185 = sadd.s32 %s26, %s25
          %s186 = smul.addr %s185, 64
          %s187 = scalar_lea.hbm %s0, %s186
          %s189 = sshll.u32 %s181, 4
          %s190 = int_to_ptr.vmem [resolvable:$true] %s189
          %192 = dma.hbm_to_vmem [thread:$0]  %s187, 64, %s190, %s178
        $region24: #{tpu_custom_call.1} parent=19 // pred_fallthru
          _
        // Predicated region
        $region25: #{tpu_custom_call.1} parent=19 // pred_check
          %p193 = pneg %p87
        $region26: #{tpu_custom_call.1} parent=19 // pred_check_branch
          %195 = sbr.rel (%p193) target = $region28
        $region27: #{tpu_custom_call.1} parent=19 // pred_region
          %s196 = sand.u32 %s18, 1
          %s197 = scalar_lea.sflag [#allocation10], %s196
          %s198 = sand.u32 %s77, 1
          %s199 = smul.addr %s198, 4
          %s200 = scalar_lea.vmem [#allocation9], %s199
          %s202 = ssub.s32 64, 64
          %203 = vsyncadd %s197, %s202
          %s204 = sadd.s32 %s27, %s25
          %s205 = smul.addr %s204, 64
          %s206 = scalar_lea.hbm %s1, %s205
          %s208 = sshll.u32 %s200, 4
          %s209 = int_to_ptr.vmem [resolvable:$true] %s208
          %211 = dma.hbm_to_vmem [thread:$0]  %s206, 64, %s209, %s197
        $region28: #{tpu_custom_call.1} parent=19 // pred_fallthru
          _
      $region20: #{tpu_custom_call.1} parent=5 // pred_fallthru
        _
      %p212 = scmp.le.s32.totalorder 1, %s18
      %p213 = scmp.lt.s32.totalorder %s18, 3
      %p214 = pnand %p212, %p213
      %p215 = pneg %p214
      // Predicated region
      $region29: #{tpu_custom_call.1} parent=5 // pred_check
        _
      $region30: #{tpu_custom_call.1} parent=5 // pred_check_branch
        %217 = sbr.rel (%p214) target = $region32
      $region31: #{tpu_custom_call.1} parent=5 // pred_region
        %s218 = ssub.s32 %s18, 1
        %s219 = sand.u32 %s52, 1
        %s220 = scalar_lea.sflag [#allocation7], %s219
        %s221 = sand.u32 %s52, 1
        %s222 = smul.addr %s221, 4
        %s223 = scalar_lea.vmem [#allocation6], %s222
        // Predicated region
        $region33: #{tpu_custom_call.1} parent=31 // pred_check
          %p224 = pneg %p65
        $region34: #{tpu_custom_call.1} parent=31 // pred_check_branch
          %226 = sbr.rel (%p224) target = $region36
        $region35: #{tpu_custom_call.1} parent=31 // pred_region
          %227 = dma.done %s220, 64
        $region36: #{tpu_custom_call.1} parent=31 // pred_fallthru
          _
        %s228 = sand.u32 %s23, 1
        %s229 = scalar_lea.sflag [#allocation10], %s228
        %s230 = sand.u32 %s80, 1
        %s231 = smul.addr %s230, 4
        %s232 = scalar_lea.vmem [#allocation9], %s231
        // Predicated region
        $region37: #{tpu_custom_call.1} parent=31 // pred_check
          %p233 = pneg %p93
        $region38: #{tpu_custom_call.1} parent=31 // pred_check_branch
          %235 = sbr.rel (%p233) target = $region40
        $region39: #{tpu_custom_call.1} parent=31 // pred_region
          %236 = dma.done %s229, 64
        $region40: #{tpu_custom_call.1} parent=31 // pred_fallthru
          _
        // Predicated region
        $region41: #{tpu_custom_call.1} parent=31 // pred_check
          %p237 = pneg %p114
        $region42: #{tpu_custom_call.1} parent=31 // pred_check_branch
          %239 = sbr.rel (%p237) target = $region44
        $region43: #{tpu_custom_call.1} parent=31 // pred_region
          %240 = dma.done [#allocation10], 768
        $region44: #{tpu_custom_call.1} parent=31 // pred_fallthru
          _
        %s241 = sand.u32 %s52, 1
        %s242 = scalar_lea.sflag [#allocation7], %s241
        %s243 = sand.u32 %s52, 1
        %s244 = smul.addr %s243, 4
        %s245 = scalar_lea.vmem [#allocation6], %s244
        %p246 = pneg %p65
        %p247 = pneg %p62
        %s248 = sand.u32 %s23, 1
        %s249 = scalar_lea.sflag [#allocation10], %s248
        %s250 = sand.u32 %s80, 1
        %s251 = smul.addr %s250, 4
        %s252 = scalar_lea.vmem [#allocation9], %s251
        %p253 = pneg %p93
        %p254 = pneg %p90
        %p255 = pneg %p114
        %p256 = pneg %p111
        %p257 = pneg %p142
        %p258 = pneg %p139
        %s259 = sand.u32 %s129, 1
        %s260 = scalar_lea.sflag [#allocation8], %s259
        %s261 = sand.u32 %s129, 1
        %s262 = smul.addr %s261, 8
        %s263 = scalar_lea.vmem [#allocation12], %s262
        %s265 = smul.u32 %s29, 8
        %s266 = smul.u32 %s30, 8
        %p267 = scmp.eq.s32.totalorder %s30, 0
        // Predicated region
        $region45: #{tpu_custom_call.1} parent=31 // pred_check
          %p268 = pneg %p267
        $region46: #{tpu_custom_call.1} parent=31 // pred_check_branch
          %270 = sbr.rel (%p268) target = $region48
        $region47: #{tpu_custom_call.1} parent=31 // pred_region
          %vm271 = vcmask 7168
          %272 = vst.msk [vmem:[#allocation3] sm:$0xff] %vm271, -inf
          %273 = vst.msk [vmem:[#allocation4] sm:$0xff] %vm271, 0.0
          %274 = vst [vmem:[#allocation5] sm:$0xff] 0.0
          %v275 = vld [vmem:[%s223] sm:$0xf]
          %v276 = vld [vmem:[#allocation11] sm:$0xf]
          %v277 = vld [vmem:[#allocation11 + $0xc] sm:$0xf]
          %v278 = vld [vmem:[#allocation11 + $0x18] sm:$0xf]
          %v279 = vld [vmem:[#allocation11 + $0x24] sm:$0xf]
          %v284 = vunpack.c.l.b16 %v276
          %v285 = vunpack.c.l.b16 %v277
          %v286 = vunpack.c.l.b16 %v278
          %v287 = vunpack.c.l.b16 %v279
          %v288 = vpack.c.b16 %v285, %v284
          %v289 = vpack.c.b16 %v287, %v286
          %vm292 = vcmask 261120
          %v294 = vsel %vm292, %v275, 0
          %296 = vmatprep.subr.bf16.mxu0 0
          %297 = vmatpush1.bf16.msra.mxu0 0
          %298 = vmatprep.subr.bf16.mxu0 0
          %299 = vmatpush1.bf16.msra.mxu0 0
          %300 = vmatprep.subr.bf16.mxu0 0
          %301 = vmatpush1.bf16.msra.mxu0 0
          %302 = vmatprep.subr.bf16.mxu0 0
          %303 = vmatpush1.bf16.msra.mxu0 0
          %304 = vmatprep.subr.bf16.mxu0 0
          %305 = vmatpush1.bf16.msra.mxu0 0
          %306 = vmatprep.subr.bf16.mxu0 0
          %307 = vmatpush1.bf16.msra.mxu0 0
          %308 = vmatprep.subr.bf16.mxu0 0
          %309 = vmatpush1.bf16.msra.mxu0 %v289
          %310 = vmatprep.subr.bf16.mxu0 0
          %311 = vmatpush1.bf16.msra.mxu0 %v288
          %312 = vmatprep.subr.bf16.mxu0 0
          %313 = vmatpush2.bf16.msra.mxu0 0
          %314 = vmatprep.subr.bf16.mxu0 0
          %315 = vmatpush2.bf16.msra.mxu0 0
          %316 = vmatprep.subr.bf16.mxu0 0
          %317 = vmatpush2.bf16.msra.mxu0 0
          %318 = vmatprep.subr.bf16.mxu0 0
          %319 = vmatpush2.bf16.msra.mxu0 0
          %320 = vmatprep.subr.bf16.mxu0 0
          %321 = vmatpush2.bf16.msra.mxu0 0
          %322 = vmatprep.subr.bf16.mxu0 0
          %323 = vmatpush2.bf16.msra.mxu0 0
          %324 = vmatprep.subr.bf16.mxu0 0
          %325 = vmatpush2.bf16.msra.mxu0 0
          %326 = vmatprep.subr.bf16.mxu0 0
          %327 = vmatpush2.bf16.msra.mxu0 0
          %328 = vmatprep.mubr.bf16.mxu0 0
          %329 = vmatmul.mubr.bf16.gmra.mxu0 %v294
          %v330 = vpop.f32.mrf.mxu0
          %v331 = vadd.f32 0.0, %v330
          %v332 = vpop.f32.mrf.mxu0
          %v333 = vpop.f32.mrf.mxu0
          %v334 = vpop.f32.mrf.mxu0
          %335 = vdwg.mxu0
          %v336 = vmul.f32 %v331, 0.25
          %v337 = vpack.c.bf16 %v336, %v336
          %338 = vst [vmem:[#allocation2] sm:$0xf] %v337
        $region48: #{tpu_custom_call.1} parent=31 // pred_fallthru
          _
        %s339 = sadd.s32 %s265, 7
        %p340 = scmp.le.s32.totalorder %s266, %s339
        // Predicated region
        $region49: #{tpu_custom_call.1} parent=31 // pred_check
          %p341 = pneg %p340
        $region50: #{tpu_custom_call.1} parent=31 // pred_check_branch
          %343 = sbr.rel (%p341) target = $region52
        $region51: #{tpu_custom_call.1} parent=31 // pred_region
          %v344 = vld [vmem:[%s232] sm:$0xf]
          %v345 = vld [vmem:[#allocation11 + $0x4] sm:$0xf]
          %v346 = vld [vmem:[#allocation11 + $0x10] sm:$0xf]
          %v347 = vld [vmem:[#allocation11 + $0x1c] sm:$0xf]
          %v348 = vld [vmem:[#allocation11 + $0x28] sm:$0xf]
          %v353 = vunpack.c.l.b16 %v345
          %v354 = vunpack.c.l.b16 %v346
          %v355 = vunpack.c.l.b16 %v347
          %v356 = vunpack.c.l.b16 %v348
          %v357 = vpack.c.b16 %v354, %v353
          %v358 = vpack.c.b16 %v356, %v355
          %vm361 = vcmask 261120
          %v363 = vsel %vm361, %v344, 0
          %365 = vmatprep.subr.bf16.mxu0 0
          %366 = vmatpush1.bf16.msra.mxu0 0
          %367 = vmatprep.subr.bf16.mxu0 0
          %368 = vmatpush1.bf16.msra.mxu0 0
          %369 = vmatprep.subr.bf16.mxu0 0
          %370 = vmatpush1.bf16.msra.mxu0 0
          %371 = vmatprep.subr.bf16.mxu0 0
          %372 = vmatpush1.bf16.msra.mxu0 0
          %373 = vmatprep.subr.bf16.mxu0 0
          %374 = vmatpush1.bf16.msra.mxu0 0
          %375 = vmatprep.subr.bf16.mxu0 0
          %376 = vmatpush1.bf16.msra.mxu0 0
          %377 = vmatprep.subr.bf16.mxu0 0
          %378 = vmatpush1.bf16.msra.mxu0 %v358
          %379 = vmatprep.subr.bf16.mxu0 0
          %380 = vmatpush1.bf16.msra.mxu0 %v357
          %381 = vmatprep.subr.bf16.mxu0 0
          %382 = vmatpush2.bf16.msra.mxu0 0
          %383 = vmatprep.subr.bf16.mxu0 0
          %384 = vmatpush2.bf16.msra.mxu0 0
          %385 = vmatprep.subr.bf16.mxu0 0
          %386 = vmatpush2.bf16.msra.mxu0 0
          %387 = vmatprep.subr.bf16.mxu0 0
          %388 = vmatpush2.bf16.msra.mxu0 0
          %389 = vmatprep.subr.bf16.mxu0 0
          %390 = vmatpush2.bf16.msra.mxu0 0
          %391 = vmatprep.subr.bf16.mxu0 0
          %392 = vmatpush2.bf16.msra.mxu0 0
          %393 = vmatprep.subr.bf16.mxu0 0
          %394 = vmatpush2.bf16.msra.mxu0 0
          %395 = vmatprep.subr.bf16.mxu0 0
          %396 = vmatpush2.bf16.msra.mxu0 0
          %397 = vmatprep.mubr.bf16.mxu0 0
          %398 = vmatmul.mubr.bf16.gmra.mxu0 %v363
          %v399 = vpop.f32.mrf.mxu0
          %v400 = vadd.f32 0.0, %v399
          %v401 = vpop.f32.mrf.mxu0
          %v402 = vpop.f32.mrf.mxu0
          %v403 = vpop.f32.mrf.mxu0
          %404 = vdwg.mxu0
          %v405 = vpack.c.bf16 %v400, %v400
          %v406 = vld [vmem:[#allocation11 + $0x8] sm:$0xf]
          %v407 = vld [vmem:[#allocation11 + $0x14] sm:$0xf]
          %v408 = vld [vmem:[#allocation11 + $0x20] sm:$0xf]
          %v409 = vld [vmem:[#allocation11 + $0x2c] sm:$0xf]
          %v414 = vunpack.c.l.b16 %v406
          %v415 = vunpack.c.l.b16 %v407
          %v416 = vunpack.c.l.b16 %v408
          %v417 = vunpack.c.l.b16 %v409
          %v418 = vpack.c.b16 %v415, %v414
          %v419 = vpack.c.b16 %v417, %v416
          %422 = vmatprep.subr.bf16.mxu0 0
          %423 = vmatpush1.bf16.msra.mxu0 0
          %424 = vmatprep.subr.bf16.mxu0 0
          %425 = vmatpush1.bf16.msra.mxu0 0
          %426 = vmatprep.subr.bf16.mxu0 0
          %427 = vmatpush1.bf16.msra.mxu0 0
          %428 = vmatprep.subr.bf16.mxu0 0
          %429 = vmatpush1.bf16.msra.mxu0 0
          %430 = vmatprep.subr.bf16.mxu0 0
          %431 = vmatpush1.bf16.msra.mxu0 0
          %432 = vmatprep.subr.bf16.mxu0 0
          %433 = vmatpush1.bf16.msra.mxu0 0
          %434 = vmatprep.subr.bf16.mxu0 0
          %435 = vmatpush1.bf16.msra.mxu0 %v419
          %436 = vmatprep.subr.bf16.mxu0 0
          %437 = vmatpush1.bf16.msra.mxu0 %v418
          %438 = vmatprep.subr.bf16.mxu0 0
          %439 = vmatpush2.bf16.msra.mxu0 0
          %440 = vmatprep.subr.bf16.mxu0 0
          %441 = vmatpush2.bf16.msra.mxu0 0
          %442 = vmatprep.subr.bf16.mxu0 0
          %443 = vmatpush2.bf16.msra.mxu0 0
          %444 = vmatprep.subr.bf16.mxu0 0
          %445 = vmatpush2.bf16.msra.mxu0 0
          %446 = vmatprep.subr.bf16.mxu0 0
          %447 = vmatpush2.bf16.msra.mxu0 0
          %448 = vmatprep.subr.bf16.mxu0 0
          %449 = vmatpush2.bf16.msra.mxu0 0
          %450 = vmatprep.subr.bf16.mxu0 0
          %451 = vmatpush2.bf16.msra.mxu0 0
          %452 = vmatprep.subr.bf16.mxu0 0
          %453 = vmatpush2.bf16.msra.mxu0 0
          %454 = vmatprep.mubr.bf16.mxu0 0
          %455 = vmatmul.mubr.bf16.gmra.mxu0 %v363
          %v456 = vpop.f32.mrf.mxu0
          %v457 = vadd.f32 0.0, %v456
          %v458 = vpop.f32.mrf.mxu0
          %v459 = vpop.f32.mrf.mxu0
          %v460 = vpop.f32.mrf.mxu0
          %461 = vdwg.mxu0
          %v462 = vpack.c.bf16 %v457, %v457
          %v463 = vld [vmem:[#allocation2] sm:$0xf]
          %464 = vmatprep.subr.bf16.mxu0 0
          %465 = vmatpush1.bf16.xpose.msra.mxu0 0
          %466 = vmatprep.subr.bf16.mxu0 0
          %467 = vmatpush1.bf16.xpose.msra.mxu0 0
          %468 = vmatprep.subr.bf16.mxu0 0
          %469 = vmatpush1.bf16.xpose.msra.mxu0 0
          %470 = vmatprep.subr.bf16.mxu0 0
          %471 = vmatpush1.bf16.xpose.msra.mxu0 0
          %472 = vmatprep.subr.bf16.mxu0 0
          %473 = vmatpush1.bf16.xpose.msra.mxu0 0
          %474 = vmatprep.subr.bf16.mxu0 0
          %475 = vmatpush1.bf16.xpose.msra.mxu0 0
          %476 = vmatprep.subr.bf16.mxu0 0
          %477 = vmatpush1.bf16.xpose.msra.mxu0 0
          %478 = vmatprep.subr.bf16.mxu0 0
          %479 = vmatpush1.bf16.xpose.msra.mxu0 %v405
          %480 = vmatprep.subr.bf16.mxu0 0
          %481 = vmatpush2.bf16.xpose.msra.mxu0 0
          %482 = vmatprep.subr.bf16.mxu0 0
          %483 = vmatpush2.bf16.xpose.msra.mxu0 0
          %484 = vmatprep.subr.bf16.mxu0 0
          %485 = vmatpush2.bf16.xpose.msra.mxu0 0
          %486 = vmatprep.subr.bf16.mxu0 0
          %487 = vmatpush2.bf16.xpose.msra.mxu0 0
          %488 = vmatprep.subr.bf16.mxu0 0
          %489 = vmatpush2.bf16.xpose.msra.mxu0 0
          %490 = vmatprep.subr.bf16.mxu0 0
          %491 = vmatpush2.bf16.xpose.msra.mxu0 0
          %492 = vmatprep.subr.bf16.mxu0 0
          %493 = vmatpush2.bf16.xpose.msra.mxu0 0
          %494 = vmatprep.subr.bf16.mxu0 0
          %495 = vmatpush2.bf16.xpose.msra.mxu0 0
          %496 = vmatprep.mubr.bf16.mxu0 0
          %497 = vmatmul.mubr.bf16.gmra.mxu0 %v463
          %v498 = vpop.f32.mrf.mxu0
          %v499 = vadd.f32 0.0, %v498
          %v500 = vpop.f32.mrf.mxu0
          %v501 = vpop.f32.mrf.mxu0
          %v502 = vpop.f32.mrf.mxu0
          %503 = vdwg.mxu0
          %v504 = vlaneseq
          %v505 = vshrl.u32 %v504, 7
          %v506 = vstv %s265
          %v507 = vadd.s32 %v506, %v505
          %v508 = vlaneseq
          %v509 = vand.u32 %v508, 127
          %v510 = vstv %s266
          %v511 = vadd.s32 %v510, %v509
          %vm512 = vcmp.le.s32.totalorder %v511, %v507
          %v513 = vsel %vm512, %v499, -1e+30
          %v514 = vld [vmem:[#allocation3] sm:$0xff]
          %vm515 = vcmask 64512
          %v516 = vsel %vm515, %v513, -inf
          %517 = vmax.xlane.f32.xlu0 %v516
          %v518 = vpop.xlane.xlu0 %517
          %v519 = vmax.f32 %v514, %v518
          %v520 = vsub.f32 %v514, %v519
          %v521 = vmul.f32 %v520, 1.442695
          %v522 = vpow.pop %v521
          %524 = vset.pattern.permute.xlu0 0
          %525 = vperm.xlu0 %524, %v519
          %v526 = vpop.permute.xlu0 %525
          %v528 = vsub.f32 %v513, %v526
          %v529 = vmul.f32 %v528, 1.442695
          %v530 = vpow.pop %v529
          %v531 = vld [vmem:[#allocation4] sm:$0xff]
          %v532 = vmul.f32 %v522, %v531
          %v533 = vsel %vm515, %v530, 0.0
          %534 = vadd.xlane.f32.xlu0 %v533
          %v535 = vpop.xlane.xlu0 %534
          %v536 = vadd.f32 %v532, %v535
          %vm537 = vcmask 7168
          %538 = vst.msk [vmem:[#allocation4] sm:$0xff] %vm537, %v536
          %v539 = vld [vmem:[#allocation5] sm:$0xff]
          %541 = vset.pattern.permute.xlu0 0
          %542 = vperm.xlu0 %541, %v522
          %v543 = vpop.permute.xlu0 %542
          %v545 = vmul.f32 %v543, %v539
          %v546 = vpack.c.bf16 %v530, %v530
          %v548 = vsel %vm515, %v546, 0
          %vm550 = vcmask 1043456
          %v552 = vsel %vm550, %v462, 0
          %554 = vmatprep.subr.bf16.mxu0 0
          %555 = vmatpush1.bf16.msra.mxu0 0
          %556 = vmatprep.subr.bf16.mxu0 0
          %557 = vmatpush1.bf16.msra.mxu0 0
          %558 = vmatprep.subr.bf16.mxu0 0
          %559 = vmatpush1.bf16.msra.mxu0 0
          %560 = vmatprep.subr.bf16.mxu0 0
          %561 = vmatpush1.bf16.msra.mxu0 0
          %562 = vmatprep.subr.bf16.mxu0 0
          %563 = vmatpush1.bf16.msra.mxu0 0
          %564 = vmatprep.subr.bf16.mxu0 0
          %565 = vmatpush1.bf16.msra.mxu0 0
          %566 = vmatprep.subr.bf16.mxu0 0
          %567 = vmatpush1.bf16.msra.mxu0 0
          %568 = vmatprep.subr.bf16.mxu0 0
          %569 = vmatpush1.bf16.msra.mxu0 %v552
          %570 = vmatprep.subr.bf16.mxu0 0
          %571 = vmatpush2.bf16.msra.mxu0 0
          %572 = vmatprep.subr.bf16.mxu0 0
          %573 = vmatpush2.bf16.msra.mxu0 0
          %574 = vmatprep.subr.bf16.mxu0 0
          %575 = vmatpush2.bf16.msra.mxu0 0
          %576 = vmatprep.subr.bf16.mxu0 0
          %577 = vmatpush2.bf16.msra.mxu0 0
          %578 = vmatprep.subr.bf16.mxu0 0
          %579 = vmatpush2.bf16.msra.mxu0 0
          %580 = vmatprep.subr.bf16.mxu0 0
          %581 = vmatpush2.bf16.msra.mxu0 0
          %582 = vmatprep.subr.bf16.mxu0 0
          %583 = vmatpush2.bf16.msra.mxu0 0
          %584 = vmatprep.subr.bf16.mxu0 0
          %585 = vmatpush2.bf16.msra.mxu0 0
          %586 = vmatprep.mubr.bf16.mxu0 0
          %587 = vmatmul.mubr.bf16.gmra.mxu0 %v548
          %v588 = vpop.f32.mrf.mxu0
          %v589 = vadd.f32 0.0, %v588
          %v590 = vpop.f32.mrf.mxu0
          %v591 = vpop.f32.mrf.mxu0
          %v592 = vpop.f32.mrf.mxu0
          %593 = vdwg.mxu0
          %v594 = vadd.f32 %v545, %v589
          %595 = vst [vmem:[#allocation5] sm:$0xff] %v594
          %596 = vst.msk [vmem:[#allocation3] sm:$0xff] %vm537, %v519
        $region52: #{tpu_custom_call.1} parent=31 // pred_fallthru
          _
        // Predicated region
        $region53: #{tpu_custom_call.1} parent=31 // pred_check
          %p597 = pneg %p267
        $region54: #{tpu_custom_call.1} parent=31 // pred_check_branch
          %599 = sbr.rel (%p597) target = $region56
        $region55: #{tpu_custom_call.1} parent=31 // pred_region
          %v600 = vld [vmem:[#allocation5] sm:$0xff]
          %v601 = vld [vmem:[#allocation4] sm:$0xff]
          %v602 = vrcp.pop %v601
          %604 = vset.pattern.permute.xlu0 0
          %605 = vperm.xlu0 %604, %v602
          %v606 = vpop.permute.xlu0 %605
          %v608 = vmul.f32 %v600, %v606
          %609 = vst [vmem:[%s263] sm:$0xff] %v608
        $region56: #{tpu_custom_call.1} parent=31 // pred_fallthru
          _
        %s610 = sand.u32 %s129, 1
        %s611 = scalar_lea.sflag [#allocation8], %s610
        %s612 = sand.u32 %s129, 1
        %s613 = smul.addr %s612, 8
        %s614 = scalar_lea.vmem [#allocation12], %s613
        // Predicated region
        $region57: #{tpu_custom_call.1} parent=31 // pred_check
          %p615 = pneg %p139
        $region58: #{tpu_custom_call.1} parent=31 // pred_check_branch
          %617 = sbr.rel (%p615) target = $region60
        $region59: #{tpu_custom_call.1} parent=31 // pred_region
          %s619 = ssub.s32 128, 128
          %620 = vsyncadd %s611, %s619
          %s621 = sadd.s32 %s29, %s28
          %s622 = smul.addr %s621, 128
          %s623 = scalar_lea.hbm %s3, %s622
          %s625 = sshll.u32 %s614, 4
          %s626 = int_to_ptr.vmem [resolvable:$true] %s625
          %628 = dma.vmem_to_hbm [thread:$0]  %s626, 128, %s623, %s611
        $region60: #{tpu_custom_call.1} parent=31 // pred_fallthru
          _
      $region32: #{tpu_custom_call.1} parent=5 // pred_fallthru
        _
      %p629 = scmp.le.s32.totalorder 2, %s18
      // Predicated region
      $region61: #{tpu_custom_call.1} parent=5 // pred_check
        %p630 = pneg %p629
      $region62: #{tpu_custom_call.1} parent=5 // pred_check_branch
        %632 = sbr.rel (%p630) target = $region64
      $region63: #{tpu_custom_call.1} parent=5 // pred_region
        %s633 = ssub.s32 %s18, 2
        // Predicated region
        $region65: #{tpu_custom_call.1} parent=63 // pred_check
          %p634 = pneg %p145
        $region66: #{tpu_custom_call.1} parent=63 // pred_check_branch
          %636 = sbr.rel (%p634) target = $region68
        $region67: #{tpu_custom_call.1} parent=63 // pred_region
          %s637 = sand.u32 %s130, 1
          %s638 = scalar_lea.sflag [#allocation8], %s637
          %s639 = sand.u32 %s130, 1
          %s640 = smul.addr %s639, 8
          %s641 = scalar_lea.vmem [#allocation12], %s640
          %642 = dma.done %s638, 128
        $region68: #{tpu_custom_call.1} parent=63 // pred_fallthru
          _
      $region64: #{tpu_custom_call.1} parent=5 // pred_fallthru
        _
    $region6: #{tpu_custom_call.1} parent=1 // loop_footer
      %s22 = sadd.s32 1, %s18
    $region7: #{tpu_custom_call.1} parent=1 // loop_footer_branch
      %17 = sbr.rel target = $region3
    $region8: #{tpu_custom_call.1} parent=1 // loop_exit
      _
    %643 = vsyncpa [#allocation7], 1
    %s644 = scalar_lea.sflag [#allocation7], 1
    %645 = vsyncpa %s644, 1
    %646 = vsyncpa [#allocation10], 1
    %s647 = scalar_lea.sflag [#allocation10], 1
    %648 = vsyncpa %s647, 1
    %649 = vsyncpa [#allocation8], 1
    %s650 = scalar_lea.sflag [#allocation8], 1
    %651 = vsyncpa %s650, 1

</llo_original>
